<compile_context>
chip_gen: v5e
topology: v5e:2x2
jax: 0.10.0
libtpu: 0.0.40
codegen_flags: <defaults>
</compile_context>

<pallas_src>
import functools

import jax
import jax.numpy as jnp
from jax.experimental import pallas as pl
from jax.experimental.pallas import tpu as pltpu

_EPS = 1e-12


def _round_up(x, m):
    return ((x + m - 1) // m) * m


def _cosine_embedding_loss_kernel(a_ref, b_ref, y_ref, out_ref, acc_ref, *,
                                  margin, n_rows, needs_mask):
    i = pl.program_id(0)

    @pl.when(i == 0)
    def _():
        acc_ref[...] = jnp.zeros_like(acc_ref)

    a = a_ref[...].astype(jnp.float32)          # (tile_n, D)
    b = b_ref[...].astype(jnp.float32)          # (tile_n, D)
    y = y_ref[...]                              # (tile_n, 1) f32

    dot = jnp.sum(a * b, axis=-1, keepdims=True)           # (tile_n, 1)
    mag_a = jnp.sum(a * a, axis=-1, keepdims=True) + _EPS
    mag_b = jnp.sum(b * b, axis=-1, keepdims=True) + _EPS
    cos = dot * jax.lax.rsqrt(mag_a * mag_b)

    pos = 1.0 - cos
    neg = jnp.maximum(cos - margin, 0.0)
    per_row = jnp.where(y == 1.0, pos, 0.0) + jnp.where(y == -1.0, neg, 0.0)

    if needs_mask:
        # Mask rows of the ragged last block (block may overhang the batch).
        # jnp.where is a select, so any garbage/NaN in the overhang is dropped.
        tile_n = acc_ref.shape[0]
        row = i * tile_n + jax.lax.broadcasted_iota(jnp.int32, (tile_n, 1), 0)
        per_row = jnp.where(row < n_rows, per_row, 0.0)

    # Vector accumulation in VMEM -> no per-step cross-sublane reduce.
    acc_ref[...] += per_row

    @pl.when(i == pl.num_programs(0) - 1)
    def _():
        # Single reduce-to-scalar, once per call.
        out_ref[0, 0] = jnp.sum(acc_ref[...])


def contrastive_loss(embedding_a, embedding_b, label, *, margin=1.0, tile_n=None):
    """Pallas implementation of ContrastiveLoss.forward (CosineEmbeddingLoss)."""
    n, d = embedding_a.shape
    assert embedding_b.shape == (n, d)
    if n == 0:
        return jnp.float32(0.0)

    bytes_per = jnp.dtype(embedding_a.dtype).itemsize
    row_mult = 8 if bytes_per >= 4 else (16 if bytes_per == 2 else 32)

    # ---- generation-aware VMEM budget ----------------------------------
    try:
        vmem_cap = int(pltpu.get_tpu_info().vmem_capacity_bytes)
        if vmem_cap < (16 << 20):
            vmem_cap = 64 << 20
    except Exception:
        vmem_cap = 64 << 20                      # conservative (v7x per-TC)
    input_budget = (vmem_cap * 3) // 8           # 48 MiB v5e/v6e, 24 MiB v7x
    vmem_limit = min(input_budget + (16 << 20), (vmem_cap * 3) // 4)

    # Per-row VMEM cost: a + b, each double-buffered at lane-padded width,
    # plus the lane-padded (tile_n, 1) f32 label blocks (double-buffered)
    # and the (tile_n, 1) f32 accumulator scratch.
    d_pad = _round_up(d, 128)
    per_row_bytes = 4 * d_pad * bytes_per + 3 * 128 * 4

    if tile_n is None:
        tile_n = max(row_mult, (input_budget // per_row_bytes) // row_mult * row_mult)
    else:
        tile_n = _round_up(max(tile_n, row_mult), row_mult)

    # Don't pick a tile bigger than the batch; for tiny batches use the full
    # batch as a single block (block_shape == array dim is always legal).
    if n < row_mult:
        tile_n = n
    else:
        tile_n = min(tile_n, (n // row_mult) * row_mult)

    steps = pl.cdiv(n, tile_n)
    needs_mask = (n % tile_n) != 0

    y2d = label.reshape(n, 1).astype(jnp.float32)

    kernel = functools.partial(
        _cosine_embedding_loss_kernel,
        margin=float(margin), n_rows=n, needs_mask=needs_mask)

    total = pl.pallas_call(
        kernel,
        out_shape=jax.ShapeDtypeStruct((1, 1), jnp.float32),
        grid_spec=pltpu.PrefetchScalarGridSpec(
            num_scalar_prefetch=0,
            grid=(steps,),
            in_specs=[
                pl.BlockSpec((tile_n, d), lambda i: (i, 0)),
                pl.BlockSpec((tile_n, d), lambda i: (i, 0)),
                pl.BlockSpec((tile_n, 1), lambda i: (i, 0)),
            ],
            out_specs=pl.BlockSpec((1, 1), lambda i: (0, 0),
                                   memory_space=pltpu.SMEM),
            scratch_shapes=[pltpu.VMEM((tile_n, 1), jnp.float32)],
        ),
        compiler_params=pltpu.CompilerParams(
            dimension_semantics=("arbitrary",),
            vmem_limit_bytes=int(vmem_limit),
        ),
    )(embedding_a, embedding_b, y2d)

    # Mean over the ORIGINAL batch size.
    return total[0, 0] / jnp.float32(n)


def _reference(a, b, y, margin=1.0):
    a = a.astype(jnp.float32)
    b = b.astype(jnp.float32)
    dot = jnp.sum(a * b, axis=-1)
    mag_a = jnp.sum(a * a, axis=-1) + _EPS
    mag_b = jnp.sum(b * b, axis=-1) + _EPS
    cos = dot / jnp.sqrt(mag_a * mag_b)
    pos = 1.0 - cos
    neg = jnp.maximum(cos - margin, 0.0)
    per = jnp.where(y == 1, pos, 0.0) + jnp.where(y == -1, neg, 0.0)
    return jnp.mean(per)


if __name__ == "__main__":
    key = jax.random.PRNGKey(0)
    k_a, k_b, k_y = jax.random.split(key, 3)

    # Aligned batch.
    N, D = 8, 32
    embedding_a = jax.random.normal(k_a, (N, D), dtype=jnp.float32)
    embedding_b = jax.random.normal(k_b, (N, D), dtype=jnp.float32)
    label = jnp.where(
        jax.random.bernoulli(k_y, 0.5, (N,)), jnp.int32(1), jnp.int32(-1))

    loss = contrastive_loss(embedding_a, embedding_b, label, margin=1.0)
    jax.block_until_ready(loss)
    ref = _reference(embedding_a, embedding_b, label, margin=1.0)
    assert jnp.allclose(loss, ref, atol=1e-5, rtol=1e-5), (loss, ref)

    # Ragged batch (exercises the in-kernel tail mask; no padded HBM copies).
    N2, D2 = 13, 32
    k_a2, k_b2, k_y2 = jax.random.split(jax.random.PRNGKey(1), 3)
    a2 = jax.random.normal(k_a2, (N2, D2), dtype=jnp.float32)
    b2 = jax.random.normal(k_b2, (N2, D2), dtype=jnp.float32)
    y2 = jnp.where(
        jax.random.bernoulli(k_y2, 0.5, (N2,)), jnp.int32(1), jnp.int32(-1))

    loss2 = contrastive_loss(a2, b2, y2, margin=1.0)
    jax.block_until_ready(loss2)
    ref2 = _reference(a2, b2, y2, margin=1.0)
    assert jnp.allclose(loss2, ref2, atol=1e-5, rtol=1e-5), (loss2, ref2)

    print("KERNEL_OK")
</pallas_src>

<mosaic_0001>
module attributes {stable_mosaic.version = 11 : i64} {
  func.func @_cosine_embedding_loss_kernel(%arg0: i32, %arg1: memref<8x32xf32, #tpu.memory_space<vmem>>, %arg2: memref<8x32xf32, #tpu.memory_space<vmem>>, %arg3: memref<8x1xf32, #tpu.memory_space<vmem>>, %arg4: memref<1x1xf32, #tpu.memory_space<smem>>, %arg5: memref<8x1xf32, #tpu.memory_space<vmem>>) attributes {dimension_semantics = [#tpu.dimension_semantics<arbitrary>], iteration_bounds = array<i64: 1>, scalar_prefetch = 0 : i64, scratch_operands = 1 : i64, tpu.core_type = #tpu.core_type<tc>, window_params = [{transform_indices = @transform_0, window_bounds = array<i64: 8, 32>}, {transform_indices = @transform_1, window_bounds = array<i64: 8, 32>}, {transform_indices = @transform_2, window_bounds = array<i64: 8, 1>}, {transform_indices = @transform_3, window_bounds = array<i64: 1, 1>}]} {
    %c0_i32 = arith.constant 0 : i32
    %0 = arith.cmpi eq, %arg0, %c0_i32 : i32
    %1 = arith.extui %0 : i1 to i32
    %c0_i32_0 = arith.constant 0 : i32
    %2 = arith.cmpi ne, %1, %c0_i32_0 : i32
    scf.if %2 {
      %cst_23 = arith.constant 0.000000e+00 : f32
      %43 = vector.broadcast %cst_23 : f32 to vector<8x1xf32>
      %c0_24 = arith.constant 0 : index
      %c0_25 = arith.constant 0 : index
      %44 = vector.load %arg5[%c0_24, %c0_25] : memref<8x1xf32, #tpu.memory_space<vmem>>, vector<8x1xf32>
      tpu.vector_store %arg5[%c0_24, %c0_25], %43 {strides = array<i32>} : memref<8x1xf32, #tpu.memory_space<vmem>>, vector<8x1xf32>,
    } else {
    }
    %c0 = arith.constant 0 : index
    %c0_1 = arith.constant 0 : index
    %3 = vector.load %arg1[%c0, %c0_1] : memref<8x32xf32, #tpu.memory_space<vmem>>, vector<8x32xf32>
    %c0_2 = arith.constant 0 : index
    %c0_3 = arith.constant 0 : index
    %4 = vector.load %arg2[%c0_2, %c0_3] : memref<8x32xf32, #tpu.memory_space<vmem>>, vector<8x32xf32>
    %c0_4 = arith.constant 0 : index
    %c0_5 = arith.constant 0 : index
    %5 = vector.load %arg3[%c0_4, %c0_5] : memref<8x1xf32, #tpu.memory_space<vmem>>, vector<8x1xf32>
    %6 = arith.mulf %3, %4 : vector<8x32xf32>
    %cst = arith.constant dense<0.000000e+00> : vector<8xf32>
    %7 = vector.multi_reduction <add>, %6, %cst [1] : vector<8x32xf32> to vector<8xf32>
    %8 = vector.shape_cast %7 : vector<8xf32> to vector<8x1xf32>
    %9 = arith.mulf %3, %3 : vector<8x32xf32>
    %cst_6 = arith.constant dense<0.000000e+00> : vector<8xf32>
    %10 = vector.multi_reduction <add>, %9, %cst_6 [1] : vector<8x32xf32> to vector<8xf32>
    %11 = vector.shape_cast %10 : vector<8xf32> to vector<8x1xf32>
    %cst_7 = arith.constant 9.99999996E-13 : f32
    %12 = vector.broadcast %cst_7 : f32 to vector<8x1xf32>
    %13 = arith.addf %11, %12 : vector<8x1xf32>
    %14 = arith.mulf %4, %4 : vector<8x32xf32>
    %cst_8 = arith.constant dense<0.000000e+00> : vector<8xf32>
    %15 = vector.multi_reduction <add>, %14, %cst_8 [1] : vector<8x32xf32> to vector<8xf32>
    %16 = vector.shape_cast %15 : vector<8xf32> to vector<8x1xf32>
    %cst_9 = arith.constant 9.99999996E-13 : f32
    %17 = vector.broadcast %cst_9 : f32 to vector<8x1xf32>
    %18 = arith.addf %16, %17 : vector<8x1xf32>
    %19 = arith.mulf %13, %18 : vector<8x1xf32>
    %20 = math.rsqrt %19 : vector<8x1xf32>
    %21 = arith.mulf %8, %20 : vector<8x1xf32>
    %cst_10 = arith.constant 1.000000e+00 : f32
    %22 = vector.broadcast %cst_10 : f32 to vector<8x1xf32>
    %23 = arith.subf %22, %21 : vector<8x1xf32>
    %cst_11 = arith.constant 1.000000e+00 : f32
    %24 = vector.broadcast %cst_11 : f32 to vector<8x1xf32>
    %25 = arith.subf %21, %24 : vector<8x1xf32>
    %cst_12 = arith.constant 0.000000e+00 : f32
    %26 = vector.broadcast %cst_12 : f32 to vector<8x1xf32>
    %27 = arith.maximumf %25, %26 : vector<8x1xf32>
    %cst_13 = arith.constant 1.000000e+00 : f32
    %28 = vector.broadcast %cst_13 : f32 to vector<8x1xf32>
    %29 = arith.cmpf oeq, %5, %28 : vector<8x1xf32>
    %cst_14 = arith.constant 0.000000e+00 : f32
    %30 = vector.broadcast %cst_14 : f32 to vector<8x1xf32>
    %31 = arith.select %29, %23, %30 : vector<8x1xi1>, vector<8x1xf32>
    %cst_15 = arith.constant -1.000000e+00 : f32
    %32 = vector.broadcast %cst_15 : f32 to vector<8x1xf32>
    %33 = arith.cmpf oeq, %5, %32 : vector<8x1xf32>
    %cst_16 = arith.constant 0.000000e+00 : f32
    %34 = vector.broadcast %cst_16 : f32 to vector<8x1xf32>
    %35 = arith.select %33, %27, %34 : vector<8x1xi1>, vector<8x1xf32>
    %36 = arith.addf %31, %35 : vector<8x1xf32>
    %c0_17 = arith.constant 0 : index
    %c0_18 = arith.constant 0 : index
    %37 = vector.load %arg5[%c0_17, %c0_18] : memref<8x1xf32, #tpu.memory_space<vmem>>, vector<8x1xf32>
    %38 = arith.addf %37, %36 : vector<8x1xf32>
    %c0_19 = arith.constant 0 : index
    %c0_20 = arith.constant 0 : index
    %39 = vector.load %arg5[%c0_19, %c0_20] : memref<8x1xf32, #tpu.memory_space<vmem>>, vector<8x1xf32>
    tpu.vector_store %arg5[%c0_19, %c0_20], %38 {strides = array<i32>} : memref<8x1xf32, #tpu.memory_space<vmem>>, vector<8x1xf32>,
    %c0_i32_21 = arith.constant 0 : i32
    %40 = arith.cmpi eq, %arg0, %c0_i32_21 : i32
    %41 = arith.extui %40 : i1 to i32
    %c0_i32_22 = arith.constant 0 : i32
    %42 = arith.cmpi ne, %41, %c0_i32_22 : i32
    scf.if %42 {
      %c0_23 = arith.constant 0 : index
      %c0_24 = arith.constant 0 : index
      %43 = vector.load %arg5[%c0_23, %c0_24] : memref<8x1xf32, #tpu.memory_space<vmem>>, vector<8x1xf32>
      %44 = vector.shape_cast %43 : vector<8x1xf32> to vector<1x8x1xf32>
      %cst_25 = arith.constant dense<0.000000e+00> : vector<1xf32>
      %45 = vector.multi_reduction <add>, %44, %cst_25 [1, 2] : vector<1x8x1xf32> to vector<1xf32>
      %46 = vector.shape_cast %45 : vector<1xf32> to vector<1x1x1xf32>
      %47 = vector.extract %46[0, 0, 0] : f32 from vector<1x1x1xf32>
      %c0_26 = arith.constant 0 : index
      %c0_27 = arith.constant 0 : index
      %48 = memref.load %arg4[%c0_26, %c0_27] : memref<1x1xf32, #tpu.memory_space<smem>>
      memref.store %47, %arg4[%c0_26, %c0_27] : memref<1x1xf32, #tpu.memory_space<smem>>
    } else {
    }
    return
  }
  func.func @transform_0(%arg0: i32) -> (i32, i32) {
    %c0_i32 = arith.constant 0 : i32
    %c0_i32_0 = arith.constant 0 : i32
    return %arg0, %c0_i32 : i32, i32
  }
  func.func @transform_1(%arg0: i32) -> (i32, i32) {
    %c0_i32 = arith.constant 0 : i32
    %c0_i32_0 = arith.constant 0 : i32
    return %arg0, %c0_i32 : i32, i32
  }
  func.func @transform_2(%arg0: i32) -> (i32, i32) {
    %c0_i32 = arith.constant 0 : i32
    %c0_i32_0 = arith.constant 0 : i32
    return %arg0, %c0_i32 : i32, i32
  }
  func.func @transform_3(%arg0: i32) -> (i32, i32) {
    %c0_i32 = arith.constant 0 : i32
    %c0_i32_0 = arith.constant 0 : i32
    %c0_i32_1 = arith.constant 0 : i32
    return %c0_i32, %c0_i32_0 : i32, i32
  }
}

</mosaic_0001>

<llo_original>
// kernel: tpu_custom_call.1
$region0: #{tpu_custom_call.1}
  #allocation0 [shape = 'u32[]', space=smem, size = 0x4, offset = 0x4, fixed_abs, tag = 'smem constant byte address 0x4 - core index']
  #allocation1 [shape = 'u32[72,128]{1,0:T(1,128)}', space=vmem, size = 0x9000, scoped, tag = 'internal scratch']
  #allocation2 [shape = 'f32[8,1]{1,0:T(8,128)}', space=vmem, size = 0x1000, scoped, tag = 'scratch operand']
  %s0 = inlined_call_operand.vmem [shape: f32[8,32], index: 0, kind: input, shape index: {}]
  %s1 = inlined_call_operand.hbm [shape: f32[8,32], index: 1, kind: input, shape index: {}]
  %s2 = inlined_call_operand.vmem [shape: f32[8,1], index: 2, kind: input, shape index: {}]
  %s3 = inlined_call_operand.hbm [shape: f32[1,1], index: 3, kind: output, shape index: {}]
  %s4 = sld [smem:[#allocation0]]
  $region34: #{tpu_custom_call.1} parent=0
    _
  %s6 = ssub.s32 1, %s4
  %s7 = scalar_select 0, %s6, %s4
  $region1: #{tpu_custom_call.1} parent=0
    #allocation3 [shape = 'u8[4096]{0}', space=vmem, size = 0x1000, scoped, tag = 'input window, operand 1, single buffered']
    #allocation4 [shape = 's32[1]{0}', space=sflag, size = 0x4, scoped, tag = 'scoped memory for tpu_custom_call.1']
    #allocation5 [shape = 's32[1]{0}', space=sflag, size = 0x4, scoped, tag = 'scoped memory for tpu_custom_call.1']
    #allocation6 [shape = 'u8[512]{0}', space=smem, size = 0x200, scoped, tag = 'output window, operand 0, single buffered']
    %8 = vsyncpa [#allocation4], 0
    %9 = vsyncpa [#allocation5], 0
    // Predicated region
    $region2: #{tpu_custom_call.1} parent=1 // pred_check
      _
    $region3: #{tpu_custom_call.1} parent=1 // pred_check_branch
      %11 = sbr.rel (0) target = $region5
    $region4: #{tpu_custom_call.1} parent=1 // pred_region
      _
    $region5: #{tpu_custom_call.1} parent=1 // pred_fallthru
      _
    // Predicated region
    $region6: #{tpu_custom_call.1} parent=1 // pred_check
      _
    $region7: #{tpu_custom_call.1} parent=1 // pred_check_branch
      %13 = sbr.rel (0) target = $region9
    $region8: #{tpu_custom_call.1} parent=1 // pred_region
      %15 = vsyncadd [#allocation4], 0
      %s17 = sshll.u32 %s1, 4
      %s18 = int_to_ptr.hbm [resolvable:$true] %s17
      %s19 = sshll.u32 [#allocation3], 4
      %s20 = int_to_ptr.vmem [resolvable:$true] %s19
      %22 = dma.hbm_to_vmem [thread:$0]  %s18, 128, %s20, [#allocation4]
    $region9: #{tpu_custom_call.1} parent=1 // pred_fallthru
      _
    // Predicated region
    $region10: #{tpu_custom_call.1} parent=1 // pred_check
      _
    $region11: #{tpu_custom_call.1} parent=1 // pred_check_branch
      %24 = sbr.rel (0) target = $region13
    $region12: #{tpu_custom_call.1} parent=1 // pred_region
      _
    $region13: #{tpu_custom_call.1} parent=1 // pred_fallthru
      _
    // Predicated region
    $region14: #{tpu_custom_call.1} parent=1 // pred_check
      _
    $region15: #{tpu_custom_call.1} parent=1 // pred_check_branch
      %26 = sbr.rel (0) target = $region17
    $region16: #{tpu_custom_call.1} parent=1 // pred_region
      %28 = dma.done [#allocation4], 128
    $region17: #{tpu_custom_call.1} parent=1 // pred_fallthru
      _
    %p29 = scmp.eq.s32.totalorder 0, 0
    // Predicated region
    $region18: #{tpu_custom_call.1} parent=1 // pred_check
      %p30 = pneg %p29
    $region19: #{tpu_custom_call.1} parent=1 // pred_check_branch
      %32 = sbr.rel (%p30) target = $region21
    $region20: #{tpu_custom_call.1} parent=1 // pred_region
      %vm33 = vcmask 7168
      %34 = vst.msk [vmem:[#allocation2] sm:$0xff] %vm33, 0.0
    $region21: #{tpu_custom_call.1} parent=1 // pred_fallthru
      _
    %v35 = vld [vmem:[%s0] sm:$0xff]
    %v36 = vld [vmem:[#allocation3] sm:$0xff]
    %v37 = vld [vmem:[%s2] sm:$0xff]
    %v38 = vmul.f32 %v35, %v36
    %vm39 = vcmask 261120
    %v40 = vsel %vm39, %v38, 0.0
    %41 = vadd.xlane.f32.xlu0 %v40
    %v42 = vpop.xlane.xlu0 %41
    %v43 = vmul.f32 %v35, %v35
    %v44 = vsel %vm39, %v43, 0.0
    %45 = vadd.xlane.f32.xlu0 %v44
    %v46 = vpop.xlane.xlu0 %45
    %v47 = vadd.f32 %v46, 1e-12
    %v48 = vmul.f32 %v36, %v36
    %v49 = vsel %vm39, %v48, 0.0
    %50 = vadd.xlane.f32.xlu0 %v49
    %v51 = vpop.xlane.xlu0 %50
    %v52 = vadd.f32 %v51, 1e-12
    %v53 = vmul.f32 %v47, %v52
    %v54 = vrsqrt.pop %v53
    %v55 = vmul.f32 %v54, %v53
    %v56 = vmul.f32 %v55, %v54
    %v57 = vmul.f32 0.5, %v56
    %v58 = vsub.f32 1.5, %v57
    %v59 = vmul.f32 %v54, %v58
    %vm60 = vweird.f32 %v53
    %vm61 = vweird.f32 %v54
    %vm62 = vmor %vm60, %vm61
    %v63 = vsel %vm62, %v54, %v59
    %v64 = vmul.f32 %v42, %v63
    %v65 = vsub.f32 1.0, %v64
    %v66 = vsub.f32 %v64, 1.0
    %v67 = vmax.f32 %v66, 0.0
    %vm68 = vcmp.eq.f32.partialorder %v37, 1.0
    %v69 = vsel %vm68, %v65, 0.0
    %vm70 = vcmp.eq.f32.partialorder %v37, -1.0
    %v71 = vsel %vm70, %v67, 0.0
    %v72 = vadd.f32 %v69, %v71
    %v73 = vld [vmem:[#allocation2] sm:$0xff]
    %v74 = vadd.f32 %v73, %v72
    %vm75 = vcmask 7168
    %76 = vst.msk [vmem:[#allocation2] sm:$0xff] %vm75, %v74
    // Predicated region
    $region22: #{tpu_custom_call.1} parent=1 // pred_check
      %p77 = pneg %p29
    $region23: #{tpu_custom_call.1} parent=1 // pred_check_branch
      %79 = sbr.rel (%p77) target = $region25
    $region24: #{tpu_custom_call.1} parent=1 // pred_region
      %v80 = vld [vmem:[#allocation2] sm:$0xff]
      %v81 = vsel %vm75, %v80, 0.0
      %82 = vadd.xlane.f32.xlu0 %v81
      %v83 = vpop.xlane.xlu0 %82
      %v84 = vrot.slane %v83, 4
      %v85 = vadd.f32 %v83, %v84
      %v86 = vrot.slane %v85, 2
      %v87 = vadd.f32 %v85, %v86
      %v88 = vrot.slane %v87, 1
      %v89 = vadd.f32 %v87, %v88
      %s90 = vtos %v89
      %s91 = scalar_lea.smem [#allocation6], 0
      %92 = sst [smem:[%s91]] %s90
    $region25: #{tpu_custom_call.1} parent=1 // pred_fallthru
      _
    // Predicated region
    $region26: #{tpu_custom_call.1} parent=1 // pred_check
      _
    $region27: #{tpu_custom_call.1} parent=1 // pred_check_branch
      %94 = sbr.rel (0) target = $region29
    $region28: #{tpu_custom_call.1} parent=1 // pred_region
      %96 = vsyncadd [#allocation5], 0
      %s98 = sshll.u32 %s3, 4
      %s99 = int_to_ptr.hbm [resolvable:$true] %s98
      %101 = dma.smem_to_hbm [#allocation6], 16, %s99, [#allocation5]
    $region29: #{tpu_custom_call.1} parent=1 // pred_fallthru
      _
    // Predicated region
    $region30: #{tpu_custom_call.1} parent=1 // pred_check
      _
    $region31: #{tpu_custom_call.1} parent=1 // pred_check_branch
      %103 = sbr.rel (0) target = $region33
    $region32: #{tpu_custom_call.1} parent=1 // pred_region
      %105 = dma.done [#allocation5], 16
    $region33: #{tpu_custom_call.1} parent=1 // pred_fallthru
      _
    %106 = sfence
    %107 = vsyncpa [#allocation4], 1
    %108 = vsyncpa [#allocation5], 1

</llo_original>
